<compile_context>
chip_gen: v7x
topology: tpu7x:2x2x1
jax: 0.10.0
libtpu: 0.0.40
codegen_flags: <defaults>
</compile_context>

<pallas_src>
import math
from functools import partial

import jax
import jax.numpy as jnp
from jax.experimental import pallas as pl
from jax.experimental.pallas import tpu as pltpu

_LANE = 128
_MAX_FOLD = 32          # cap on row->lane folding factor
_MAX_TILE_N = 4096      # cap on row-tile height (rows per grid step)


def _cdiv(a, b):
    return -(-a // b)


def _round_up(x, m):
    return ((x + m - 1) // m) * m


def _round_down(x, m):
    return (x // m) * m


def _chip_config():
    """Best-effort per-generation tuning knobs (safe fallbacks if queries fail).

    Returns (num_tensorcores, vmem_limit_bytes, tile_budget_bytes), where
    tile_budget_bytes bounds the double-buffered x+out tile footprint.
    """
    vmem_cap = 64 * 1024 * 1024          # assume small (v7x-sized) VMEM if unknown
    num_tc = 2                           # assume multi-TC unless identified as 1-TC
    try:
        cap = getattr(pltpu.get_tpu_info(), "vmem_capacity_bytes", None)
        if cap:
            vmem_cap = int(cap)
    except Exception:
        pass
    try:
        kind = jax.devices()[0].device_kind.lower()
        if any(tag in kind for tag in
               ("v5e", "v5 lite", "v5lite", "v6e", "v6 lite", "v6lite")):
            num_tc = 1                   # v5e / v6e: one TensorCore per chip
    except Exception:
        pass
    # 128 MiB chips (v5e/v6e): limit 64 MiB, tile budget 32 MiB.
    # 64 MiB chips (v7x):      limit 32 MiB, tile budget 16 MiB.
    vmem_limit = min(64 * 1024 * 1024, max(vmem_cap // 2, 16 * 1024 * 1024))
    tile_budget = min(32 * 1024 * 1024, vmem_limit // 2)
    return num_tc, vmem_limit, tile_budget


def _pick_fold(d, n):
    """Fold factor k: view (N, D) as (N/k, D*k) so the last dim is lane-dense.

    Only returns k > 1 when the reshape is completely free (k divides N), so
    the wrapper never pays a pad / slice HBM pass.  k is the largest free
    divisor of lcm(D, 128)/D, so D*k is as lane-aligned as a free fold allows
    (an exact multiple of 128 when k == lcm(D, 128)/D).
    """
    if d % _LANE == 0 or n <= 1:
        return 1
    ideal = _LANE // math.gcd(d, _LANE)          # == lcm(D, 128) / D
    if ideal > _MAX_FOLD:
        return 1
    fold = math.gcd(ideal, n)
    return fold if fold > 1 else 1


def _normalization_kernel(x_ref, mean_ref, inv_std_ref, o_ref):
    # x_ref: (tile_n, tile_d); mean/inv_std: (1, tile_d) f32 -> broadcast rows.
    x = x_ref[...].astype(jnp.float32)
    o_ref[...] = ((x - mean_ref[...]) * inv_std_ref[...]).astype(o_ref.dtype)


@partial(jax.jit, static_argnames=("out_dtype",))
def normalization_layer(x, mean, std, out_dtype=None):
    """Pallas TPU NormalizationLayer.forward: (x - mean) / std.

    out_dtype=None follows NumPy/PyTorch type promotion of (x, mean, std);
    pass e.g. jnp.bfloat16 to halve the write bandwidth when acceptable.
    """
    orig_shape = x.shape
    d = orig_shape[-1]
    mean = jnp.asarray(mean).reshape(-1)
    std = jnp.asarray(std).reshape(-1)
    assert mean.shape == (d,) and std.shape == (d,), "per-feature mean/std expected"

    if out_dtype is None:
        out_dtype = jnp.result_type(x.dtype, mean.dtype, std.dtype)

    # Flatten leading dims -> (N, D): contiguous reshape, no extra HBM traffic.
    x2 = x.reshape(-1, d)
    n = x2.shape[0]

    # Stats in f32; precompute the reciprocal so the kernel only multiplies.
    mean_f32 = mean.astype(jnp.float32)[None, :]
    inv_std_f32 = (1.0 / std.astype(jnp.float32))[None, :]

    # ---- Free lane-dense folding (never pads / slices) ---------------------
    fold = _pick_fold(d, n)
    d_eff = d * fold
    rows = n // fold
    x_f = x2.reshape(rows, d_eff)
    mean_f = jnp.tile(mean_f32, (1, fold)) if fold > 1 else mean_f32
    inv_std_f = jnp.tile(inv_std_f32, (1, fold)) if fold > 1 else inv_std_f32

    # ---- Per-generation tile selection --------------------------------------
    num_tc, vmem_limit, tile_budget = _chip_config()
    x_isz = jnp.dtype(x.dtype).itemsize
    o_isz = jnp.dtype(out_dtype).itemsize
    pair_bytes = x_isz + o_isz
    sublane = max(8, 32 // x_isz, 32 // o_isz)

    # Feature tile: keep the whole (folded) feature axis in one block whenever
    # the budget allows (grid_cols == 1 -> contiguous per-row HBM reads, one
    # fetch of mean/inv_std); otherwise split into near-even 128-multiples.
    max_tile_d = max(_LANE,
                     _round_down(tile_budget // (2 * sublane * pair_bytes), _LANE))
    if d_eff <= max_tile_d:
        tile_d = d_eff
    else:
        tile_d = _round_up(_cdiv(d_eff, _cdiv(d_eff, max_tile_d)), _LANE)
    grid_cols = _cdiv(d_eff, tile_d)

    # Row tile: as tall as the double-buffered (x + out) budget allows.
    budget_rows = tile_budget // (2 * tile_d * pair_bytes)
    tile_n = max(sublane, _round_down(min(_MAX_TILE_N, budget_rows), sublane))

    # Split the row axis for parallelism only on multi-TensorCore chips (v7x),
    # and then into an EVEN number of steps so both cores get equal work.  On
    # single-TC v5e/v6e the split is pure per-step overhead -> keep big tiles.
    if num_tc >= 2 and rows >= 2 * sublane:
        steps = max(2, _round_up(_cdiv(rows, tile_n), 2))
        cand = max(sublane, _round_up(_cdiv(rows, steps), sublane))
        if _cdiv(rows, cand) % 2 == 0:
            tile_n = cand
    if tile_n > rows:
        tile_n = rows          # single block spanning all rows (block == full dim)
    grid_rows = _cdiv(rows, tile_n)

    out_f = pl.pallas_call(
        _normalization_kernel,
        out_shape=jax.ShapeDtypeStruct((rows, d_eff), out_dtype),
        grid_spec=pl.GridSpec(
            grid=(grid_rows, grid_cols),
            in_specs=[
                pl.BlockSpec((tile_n, tile_d), lambda i, j: (i, j)),
                pl.BlockSpec((1, tile_d), lambda i, j: (0, j)),
                pl.BlockSpec((1, tile_d), lambda i, j: (0, j)),
            ],
            out_specs=pl.BlockSpec((tile_n, tile_d), lambda i, j: (i, j)),
        ),
        compiler_params=pltpu.CompilerParams(
            dimension_semantics=("parallel", "parallel"),
            vmem_limit_bytes=vmem_limit,
        ),
    )(x_f, mean_f, inv_std_f)

    # Undo the (free) folding and restore the original leading shape.
    return out_f.reshape(orig_shape[:-1] + (d,))


if __name__ == "__main__":
    root = jax.random.PRNGKey(0)

    def run_case(idx, shape, dtype):
        kx, km, ks = jax.random.split(jax.random.fold_in(root, idx), 3)
        d = shape[-1]
        x = jax.random.normal(kx, shape, dtype=jnp.float32).astype(dtype)
        mean = jax.random.normal(km, (d,), dtype=jnp.float32)
        std = jax.random.uniform(ks, (d,), dtype=jnp.float32,
                                 minval=0.5, maxval=1.5)
        out = jax.block_until_ready(normalization_layer(x, mean, std))
        ref = (x.astype(jnp.float32) - mean) / std
        assert out.shape == x.shape, f"shape mismatch in case {idx}"
        assert out.dtype == ref.dtype, f"dtype mismatch in case {idx}"
        assert jnp.allclose(out, ref, atol=1e-5, rtol=1e-5), (
            f"value mismatch vs reference in case {idx}")

    # Small shapes consistent with the module (N examples x D concept feats).
    run_case(0, (16, 32), jnp.float32)      # free fold x4 -> lane-dense (16 % 4 == 0)
    run_case(1, (13, 32), jnp.float32)      # ragged N -> unfolded, NO pad/slice passes
    run_case(2, (50, 200), jnp.float32)     # partial free fold x2, ragged row tile
    run_case(3, (24, 32), jnp.bfloat16)     # bf16 input, f32 stats -> f32 output
    run_case(4, (2, 8, 256), jnp.float32)   # leading batch dims, D % 128 == 0

    # Optional bf16-output override (halves write bandwidth when acceptable).
    xb = jax.random.normal(jax.random.fold_in(root, 99), (16, 128), jnp.bfloat16)
    ob = jax.block_until_ready(
        normalization_layer(xb, jnp.zeros((128,), jnp.float32),
                            jnp.ones((128,), jnp.float32),
                            out_dtype=jnp.bfloat16))
    assert ob.dtype == jnp.bfloat16 and ob.shape == xb.shape
    assert jnp.allclose(ob.astype(jnp.float32), xb.astype(jnp.float32), atol=1e-2)

    print("KERNEL_OK")
</pallas_src>

<mosaic_0001>
module attributes {stable_mosaic.version = 11 : i64} {
  func.func @_normalization_kernel(%arg0: i32, %arg1: i32, %arg2: memref<4x128xf32, #tpu.memory_space<vmem>>, %arg3: memref<1x128xf32, #tpu.memory_space<vmem>>, %arg4: memref<1x128xf32, #tpu.memory_space<vmem>>, %arg5: memref<4x128xf32, #tpu.memory_space<vmem>>) attributes {dimension_semantics = [#tpu.dimension_semantics<parallel>, #tpu.dimension_semantics<parallel>], iteration_bounds = array<i64: 1, 1>, scalar_prefetch = 0 : i64, scratch_operands = 0 : i64, tpu.core_type = #tpu.core_type<tc>, window_params = [{transform_indices = @transform_0, window_bounds = array<i64: 4, 128>}, {transform_indices = @transform_1, window_bounds = array<i64: 1, 128>}, {transform_indices = @transform_2, window_bounds = array<i64: 1, 128>}, {transform_indices = @transform_3, window_bounds = array<i64: 4, 128>}]} {
    %c0 = arith.constant 0 : index
    %c0_0 = arith.constant 0 : index
    %0 = vector.load %arg2[%c0, %c0_0] : memref<4x128xf32, #tpu.memory_space<vmem>>, vector<4x128xf32>
    %c0_1 = arith.constant 0 : index
    %c0_2 = arith.constant 0 : index
    %1 = vector.load %arg3[%c0_1, %c0_2] : memref<1x128xf32, #tpu.memory_space<vmem>>, vector<1x128xf32>
    %2 = vector.broadcast %1 : vector<1x128xf32> to vector<4x128xf32>
    %3 = arith.subf %0, %2 : vector<4x128xf32>
    %c0_3 = arith.constant 0 : index
    %c0_4 = arith.constant 0 : index
    %4 = vector.load %arg4[%c0_3, %c0_4] : memref<1x128xf32, #tpu.memory_space<vmem>>, vector<1x128xf32>
    %5 = vector.broadcast %4 : vector<1x128xf32> to vector<4x128xf32>
    %6 = arith.mulf %3, %5 : vector<4x128xf32>
    %c0_5 = arith.constant 0 : index
    %c0_6 = arith.constant 0 : index
    %7 = vector.load %arg5[%c0_5, %c0_6] : memref<4x128xf32, #tpu.memory_space<vmem>>, vector<4x128xf32>
    tpu.vector_store %arg5[%c0_5, %c0_6], %6 {strides = array<i32>} : memref<4x128xf32, #tpu.memory_space<vmem>>, vector<4x128xf32>,
    return
  }
  func.func @transform_0(%arg0: i32, %arg1: i32) -> (i32, i32) {
    %c0_i32 = arith.constant 0 : i32
    return %arg0, %arg1 : i32, i32
  }
  func.func @transform_1(%arg0: i32, %arg1: i32) -> (i32, i32) {
    %c0_i32 = arith.constant 0 : i32
    %c0_i32_0 = arith.constant 0 : i32
    return %c0_i32, %arg1 : i32, i32
  }
  func.func @transform_2(%arg0: i32, %arg1: i32) -> (i32, i32) {
    %c0_i32 = arith.constant 0 : i32
    %c0_i32_0 = arith.constant 0 : i32
    return %c0_i32, %arg1 : i32, i32
  }
  func.func @transform_3(%arg0: i32, %arg1: i32) -> (i32, i32) {
    %c0_i32 = arith.constant 0 : i32
    return %arg0, %arg1 : i32, i32
  }
}

</mosaic_0001>

<llo_original>
// kernel: normalization_layer.1
$region0: #{normalization_layer.1}
  #allocation0 [shape = 'u32[]', space=smem, size = 0x4, offset = 0x4, fixed_abs, tag = 'smem constant byte address 0x4 - core index']
  #allocation1 [shape = 'u32[144,128]{1,0:T(1,128)}', space=vmem, size = 0x12000, scoped, tag = 'internal scratch']
  %s0 = inlined_call_operand.vmem [shape: f32[4,128], index: 0, kind: input, shape index: {}]
  %s1 = inlined_call_operand.vmem [shape: f32[1,128], index: 1, kind: input, shape index: {}]
  %s2 = inlined_call_operand.vmem [shape: f32[1,128], index: 2, kind: input, shape index: {}]
  %s3 = inlined_call_operand.vmem [shape: f32[4,128], index: 3, kind: output, shape index: {}]
  %s4 = sld [smem:[#allocation0]]
  $region22: #{normalization_layer.1} parent=0
    _
  %s6 = ssub.s32 1, %s4
  %s7 = scalar_select 0, %s6, %s4
  // Predicated region
  $region2: #{normalization_layer.1} parent=0 // pred_check
    _
  $region3: #{normalization_layer.1} parent=0 // pred_check_branch
    %9 = sbr.rel (0) target = $region5
  $region4: #{normalization_layer.1} parent=0 // pred_region
    _
  $region5: #{normalization_layer.1} parent=0 // pred_fallthru
    _
  // Predicated region
  $region6: #{normalization_layer.1} parent=0 // pred_check
    _
  $region7: #{normalization_layer.1} parent=0 // pred_check_branch
    %11 = sbr.rel (0) target = $region9
  $region8: #{normalization_layer.1} parent=0 // pred_region
    _
  $region9: #{normalization_layer.1} parent=0 // pred_fallthru
    _
  // Predicated region
  $region10: #{normalization_layer.1} parent=0 // pred_check
    _
  $region11: #{normalization_layer.1} parent=0 // pred_check_branch
    %13 = sbr.rel (0) target = $region13
  $region12: #{normalization_layer.1} parent=0 // pred_region
    _
  $region13: #{normalization_layer.1} parent=0 // pred_fallthru
    _
  %v14 = vld [vmem:[%s0] sm:$0xf]
  %v15 = vld [vmem:[%s1] sm:$0x1]
  %v17 = vlaneseq
  %v18 = vshrl.u32 %v17, 7
  %v19 = vsub.s32 0, %v18
  %v20 = vrot.slane %v15, %v19
  %v22 = vsub.f32 %v14, %v20
  %v23 = vld [vmem:[%s2] sm:$0x1]
  %v25 = vlaneseq
  %v26 = vshrl.u32 %v25, 7
  %v27 = vsub.s32 0, %v26
  %v28 = vrot.slane %v23, %v27
  %v30 = vmul.f32 %v22, %v28
  %31 = vst [vmem:[%s3] sm:$0xf] %v30
  // Predicated region
  $region14: #{normalization_layer.1} parent=0 // pred_check
    _
  $region15: #{normalization_layer.1} parent=0 // pred_check_branch
    %33 = sbr.rel (0) target = $region17
  $region16: #{normalization_layer.1} parent=0 // pred_region
    _
  $region17: #{normalization_layer.1} parent=0 // pred_fallthru
    _
  // Predicated region
  $region18: #{normalization_layer.1} parent=0 // pred_check
    _
  $region19: #{normalization_layer.1} parent=0 // pred_check_branch
    %35 = sbr.rel (0) target = $region21
  $region20: #{normalization_layer.1} parent=0 // pred_region
    _
  $region21: #{normalization_layer.1} parent=0 // pred_fallthru
    _

</llo_original>
